<compile_context>
chip_gen: v6e
topology: v6e:2x2x1
jax: 0.10.0
libtpu: 0.0.40
codegen_flags: <defaults>
</compile_context>

<pallas_src>
import functools

import jax
import jax.numpy as jnp
from jax import lax
from jax.experimental import pallas as pl
from jax.experimental.pallas import tpu as pltpu

NUM_STEPS = 5


def _snn_kernel(num_layers, num_steps, batch, beta, threshold, *refs):
    """refs = (x2d_ref, w_refs..., spk2d_ref, pot2d_ref).

    x2d_ref : (T*B, F0)         time-major flattened spike train
    w_refs  : each (out, in)    PyTorch Linear layout (bias-free)
    outputs : each (T*B, out)   last layer's spikes / membrane potentials
    """
    x_ref = refs[0]
    w_refs = refs[1:1 + num_layers]
    spk_ref = refs[1 + num_layers]
    pot_ref = refs[2 + num_layers]

    # ---- Hoisted current chain: num_layers MXU dots total (no time recurrence). ----
    cur = x_ref[...]                                    # (T*B, F0)
    for n in range(num_layers):
        # x @ W^T with W in [out, in] layout: contract on RHS dim 1 (transposed-RHS).
        cur = lax.dot_general(
            cur, w_refs[n][...],
            dimension_numbers=(((1,), (1,)), ((), ())),
            preferred_element_type=jnp.float32)
    out_dim = cur.shape[1]                              # (T*B, out) after last layer

    # ---- Leaky dynamics for the LAST layer only (others are dead code). ----
    # init_leaky(): membrane potential starts at zero; carried as a local value.
    mem = jnp.zeros((batch, out_dim), jnp.float32)
    spk_chunks = []
    pot_chunks = []
    for t in range(num_steps):                          # fully unrolled, T is small/static
        cur_t = cur[t * batch:(t + 1) * batch, :]       # static, sublane-aligned slice
        # beta == 1.0 specialization: skip the decay multiply entirely.
        decayed = mem if beta == 1.0 else beta * mem
        # Subtract-reset fused into a single select: decayed + cur - reset*threshold.
        mem = jnp.where(mem > threshold, decayed - threshold, decayed) + cur_t
        spk_chunks.append((mem > threshold).astype(jnp.float32))
        pot_chunks.append(mem)

    # ---- Coalesced stores: one full-block write per output. ----
    spk_ref[...] = jnp.concatenate(spk_chunks, axis=0)  # (T*B, out)
    pot_ref[...] = jnp.concatenate(pot_chunks, axis=0)  # (T*B, out)


def snn_forward(x, weights, beta=1.0, threshold=1.0):
    """x: (T, B, F0) f32; weights[i]: (out_i, in_i) f32 (PyTorch Linear layout).

    Returns (last_spikes, last_pot), each (T, B, F_last) f32 — the stacked
    equivalents of the lists returned by Net.forward(..., return_all=False).
    """
    T, B, F0 = x.shape
    num_layers = len(weights)
    out_dim = weights[-1].shape[0]

    # Free (bitcast) reshapes in HBM; keeps the kernel purely 2-D.
    x2d = jnp.asarray(x, jnp.float32).reshape(T * B, F0)
    ws = [jnp.asarray(w, jnp.float32) for w in weights]   # no transpose: [out, in] kept

    kernel = functools.partial(
        _snn_kernel, num_layers, T, B, float(beta), float(threshold))

    # Gridless single invocation: whole operands as VMEM-resident blocks.
    vmem_spec = pl.BlockSpec(memory_space=pltpu.MemorySpace.VMEM)

    spk2d, pot2d = pl.pallas_call(
        kernel,
        out_shape=(
            jax.ShapeDtypeStruct((T * B, out_dim), jnp.float32),
            jax.ShapeDtypeStruct((T * B, out_dim), jnp.float32),
        ),
        in_specs=[vmem_spec] * (1 + num_layers),
        out_specs=(vmem_spec, vmem_spec),
    )(x2d, *ws)

    return spk2d.reshape(T, B, out_dim), pot2d.reshape(T, B, out_dim)


def snn_forward_ref(x, weights, beta=1.0, threshold=1.0):
    """Pure-JAX reference mirroring the PyTorch forward, for verification."""
    T, B, _ = x.shape
    mems = [jnp.zeros((B, w.shape[0]), jnp.float32) for w in weights]
    spk_out, pot_out = [], []
    for t in range(T):
        inp = x[t]
        for n, w in enumerate(weights):
            cur = inp @ w.T
            reset = (mems[n] > threshold).astype(jnp.float32)
            mem_new = beta * mems[n] + cur - reset * threshold
            spk = (mem_new > threshold).astype(jnp.float32)
            mems[n] = mem_new
            inp = cur
        spk_out.append(spk)
        pot_out.append(mems[-1])
    return jnp.stack(spk_out), jnp.stack(pot_out)


if __name__ == "__main__":
    # Small shapes consistent with Net(layers=(...)): two bias-free Linear layers.
    layers = (8, 16, 8)
    batch = 8          # sublane-aligned batch
    beta = 1.0         # loss_value in Net.__init__
    threshold = 1.0    # snn.Leaky default

    key = jax.random.PRNGKey(0)
    kx, k1, k2 = jax.random.split(key, 3)

    # Binary spike-train input, time-major: [num_steps, batch, in_features].
    x = jax.random.bernoulli(kx, 0.5, (NUM_STEPS, batch, layers[0])).astype(jnp.float32)

    # Deterministic Linear weights (PyTorch layout [out, in], kaiming-uniform-style).
    def init_w(k, out_f, in_f):
        bound = 1.0 / (in_f ** 0.5)
        return jax.random.uniform(k, (out_f, in_f), jnp.float32, -bound, bound)

    weights = [init_w(k1, layers[1], layers[0]), init_w(k2, layers[2], layers[1])]

    spk, pot = snn_forward(x, weights, beta=beta, threshold=threshold)
    spk, pot = jax.block_until_ready((spk, pot))

    spk_ref, pot_ref = snn_forward_ref(x, weights, beta=beta, threshold=threshold)
    assert jnp.allclose(spk, spk_ref, atol=1e-5), "spike mismatch vs reference"
    assert jnp.allclose(pot, pot_ref, atol=1e-5), "potential mismatch vs reference"

    # TODO(synk): Net.merge() is offline parameter surgery (no forward compute) and is
    # intentionally not part of the kernel.
    print("KERNEL_OK")
</pallas_src>

<mosaic_0001>
module attributes {stable_mosaic.version = 11 : i64} {
  func.func @_snn_kernel(%arg0: memref<40x8xf32, #tpu.memory_space<vmem>>, %arg1: memref<16x8xf32, #tpu.memory_space<vmem>>, %arg2: memref<8x16xf32, #tpu.memory_space<vmem>>, %arg3: memref<40x8xf32, #tpu.memory_space<vmem>>, %arg4: memref<40x8xf32, #tpu.memory_space<vmem>>) attributes {dimension_semantics = [], scalar_prefetch = 0 : i64, scratch_operands = 0 : i64, tpu.core_type = #tpu.core_type<tc>} {
    %c0 = arith.constant 0 : index
    %c0_0 = arith.constant 0 : index
    %0 = vector.load %arg0[%c0, %c0_0] : memref<40x8xf32, #tpu.memory_space<vmem>>, vector<40x8xf32>
    %c0_1 = arith.constant 0 : index
    %c0_2 = arith.constant 0 : index
    %1 = vector.load %arg1[%c0_1, %c0_2] : memref<16x8xf32, #tpu.memory_space<vmem>>, vector<16x8xf32>
    %cst = arith.constant dense<0.000000e+00> : vector<40x16xf32>
    %2 = tpu.matmul %0, %1, %cst {dimension_numbers = #tpu.dot_dimension_numbers<[1], [1], [0], [0], [0, 0, 1, 0], [], []>} : vector<40x8xf32>, vector<16x8xf32>, vector<40x16xf32> -> vector<40x16xf32>
    %c0_3 = arith.constant 0 : index
    %c0_4 = arith.constant 0 : index
    %3 = vector.load %arg2[%c0_3, %c0_4] : memref<8x16xf32, #tpu.memory_space<vmem>>, vector<8x16xf32>
    %cst_5 = arith.constant dense<0.000000e+00> : vector<40x8xf32>
    %4 = tpu.matmul %2, %3, %cst_5 {dimension_numbers = #tpu.dot_dimension_numbers<[1], [1], [0], [0], [0, 0, 1, 0], [], []>} : vector<40x16xf32>, vector<8x16xf32>, vector<40x8xf32> -> vector<40x8xf32>
    %cst_6 = arith.constant 0.000000e+00 : f32
    %5 = vector.broadcast %cst_6 : f32 to vector<8x8xf32>
    %6 = vector.extract_strided_slice %4 {offsets = [0, 0], sizes = [8, 8], strides = [1, 1]} : vector<40x8xf32> to vector<8x8xf32>
    %cst_7 = arith.constant 1.000000e+00 : f32
    %7 = vector.broadcast %cst_7 : f32 to vector<8x8xf32>
    %8 = arith.cmpf ogt, %5, %7 : vector<8x8xf32>
    %cst_8 = arith.constant 1.000000e+00 : f32
    %9 = vector.broadcast %cst_8 : f32 to vector<8x8xf32>
    %10 = arith.subf %5, %9 : vector<8x8xf32>
    %11 = arith.select %8, %10, %5 : vector<8x8xi1>, vector<8x8xf32>
    %12 = arith.addf %11, %6 : vector<8x8xf32>
    %cst_9 = arith.constant 1.000000e+00 : f32
    %13 = vector.broadcast %cst_9 : f32 to vector<8x8xf32>
    %14 = arith.cmpf ogt, %12, %13 : vector<8x8xf32>
    %15 = arith.extui %14 : vector<8x8xi1> to vector<8x8xi32>
    %16 = arith.sitofp %15 : vector<8x8xi32> to vector<8x8xf32>
    %17 = vector.extract_strided_slice %4 {offsets = [8, 0], sizes = [8, 8], strides = [1, 1]} : vector<40x8xf32> to vector<8x8xf32>
    %cst_10 = arith.constant 1.000000e+00 : f32
    %18 = vector.broadcast %cst_10 : f32 to vector<8x8xf32>
    %19 = arith.cmpf ogt, %12, %18 : vector<8x8xf32>
    %cst_11 = arith.constant 1.000000e+00 : f32
    %20 = vector.broadcast %cst_11 : f32 to vector<8x8xf32>
    %21 = arith.subf %12, %20 : vector<8x8xf32>
    %22 = arith.select %19, %21, %12 : vector<8x8xi1>, vector<8x8xf32>
    %23 = arith.addf %22, %17 : vector<8x8xf32>
    %cst_12 = arith.constant 1.000000e+00 : f32
    %24 = vector.broadcast %cst_12 : f32 to vector<8x8xf32>
    %25 = arith.cmpf ogt, %23, %24 : vector<8x8xf32>
    %26 = arith.extui %25 : vector<8x8xi1> to vector<8x8xi32>
    %27 = arith.sitofp %26 : vector<8x8xi32> to vector<8x8xf32>
    %28 = vector.extract_strided_slice %4 {offsets = [16, 0], sizes = [8, 8], strides = [1, 1]} : vector<40x8xf32> to vector<8x8xf32>
    %cst_13 = arith.constant 1.000000e+00 : f32
    %29 = vector.broadcast %cst_13 : f32 to vector<8x8xf32>
    %30 = arith.cmpf ogt, %23, %29 : vector<8x8xf32>
    %cst_14 = arith.constant 1.000000e+00 : f32
    %31 = vector.broadcast %cst_14 : f32 to vector<8x8xf32>
    %32 = arith.subf %23, %31 : vector<8x8xf32>
    %33 = arith.select %30, %32, %23 : vector<8x8xi1>, vector<8x8xf32>
    %34 = arith.addf %33, %28 : vector<8x8xf32>
    %cst_15 = arith.constant 1.000000e+00 : f32
    %35 = vector.broadcast %cst_15 : f32 to vector<8x8xf32>
    %36 = arith.cmpf ogt, %34, %35 : vector<8x8xf32>
    %37 = arith.extui %36 : vector<8x8xi1> to vector<8x8xi32>
    %38 = arith.sitofp %37 : vector<8x8xi32> to vector<8x8xf32>
    %39 = vector.extract_strided_slice %4 {offsets = [24, 0], sizes = [8, 8], strides = [1, 1]} : vector<40x8xf32> to vector<8x8xf32>
    %cst_16 = arith.constant 1.000000e+00 : f32
    %40 = vector.broadcast %cst_16 : f32 to vector<8x8xf32>
    %41 = arith.cmpf ogt, %34, %40 : vector<8x8xf32>
    %cst_17 = arith.constant 1.000000e+00 : f32
    %42 = vector.broadcast %cst_17 : f32 to vector<8x8xf32>
    %43 = arith.subf %34, %42 : vector<8x8xf32>
    %44 = arith.select %41, %43, %34 : vector<8x8xi1>, vector<8x8xf32>
    %45 = arith.addf %44, %39 : vector<8x8xf32>
    %cst_18 = arith.constant 1.000000e+00 : f32
    %46 = vector.broadcast %cst_18 : f32 to vector<8x8xf32>
    %47 = arith.cmpf ogt, %45, %46 : vector<8x8xf32>
    %48 = arith.extui %47 : vector<8x8xi1> to vector<8x8xi32>
    %49 = arith.sitofp %48 : vector<8x8xi32> to vector<8x8xf32>
    %50 = vector.extract_strided_slice %4 {offsets = [32, 0], sizes = [8, 8], strides = [1, 1]} : vector<40x8xf32> to vector<8x8xf32>
    %cst_19 = arith.constant 1.000000e+00 : f32
    %51 = vector.broadcast %cst_19 : f32 to vector<8x8xf32>
    %52 = arith.cmpf ogt, %45, %51 : vector<8x8xf32>
    %cst_20 = arith.constant 1.000000e+00 : f32
    %53 = vector.broadcast %cst_20 : f32 to vector<8x8xf32>
    %54 = arith.subf %45, %53 : vector<8x8xf32>
    %55 = arith.select %52, %54, %45 : vector<8x8xi1>, vector<8x8xf32>
    %56 = arith.addf %55, %50 : vector<8x8xf32>
    %cst_21 = arith.constant 1.000000e+00 : f32
    %57 = vector.broadcast %cst_21 : f32 to vector<8x8xf32>
    %58 = arith.cmpf ogt, %56, %57 : vector<8x8xf32>
    %59 = arith.extui %58 : vector<8x8xi1> to vector<8x8xi32>
    %60 = arith.sitofp %59 : vector<8x8xi32> to vector<8x8xf32>
    %61 = tpu.concatenate %16, %27, %38, %49, %60 in 0 : vector<8x8xf32>, vector<8x8xf32>, vector<8x8xf32>, vector<8x8xf32>, vector<8x8xf32> -> vector<40x8xf32>
    %c0_22 = arith.constant 0 : index
    %c0_23 = arith.constant 0 : index
    %62 = vector.load %arg3[%c0_22, %c0_23] : memref<40x8xf32, #tpu.memory_space<vmem>>, vector<40x8xf32>
    tpu.vector_store %arg3[%c0_22, %c0_23], %61 {strides = array<i32>} : memref<40x8xf32, #tpu.memory_space<vmem>>, vector<40x8xf32>,
    %63 = tpu.concatenate %12, %23, %34, %45, %56 in 0 : vector<8x8xf32>, vector<8x8xf32>, vector<8x8xf32>, vector<8x8xf32>, vector<8x8xf32> -> vector<40x8xf32>
    %c0_24 = arith.constant 0 : index
    %c0_25 = arith.constant 0 : index
    %64 = vector.load %arg4[%c0_24, %c0_25] : memref<40x8xf32, #tpu.memory_space<vmem>>, vector<40x8xf32>
    tpu.vector_store %arg4[%c0_24, %c0_25], %63 {strides = array<i32>} : memref<40x8xf32, #tpu.memory_space<vmem>>, vector<40x8xf32>,
    return
  }
}

</mosaic_0001>

<llo_original>
// kernel: tpu_custom_call.1
$region0: #{tpu_custom_call.1}
  #allocation0 [shape = 'u32[]', space=smem, size = 0x4, offset = 0x4, fixed_abs, tag = 'smem constant byte address 0x4 - core index']
  #allocation1 [shape = 'u32[144,128]{1,0:T(1,128)}', space=vmem, size = 0x12000, scoped, tag = 'internal scratch']
  %s0 = inlined_call_operand.vmem [shape: f32[40,8], index: 0, kind: input, shape index: {}]
  %s1 = inlined_call_operand.vmem [shape: f32[16,8], index: 1, kind: input, shape index: {}]
  %s2 = inlined_call_operand.vmem [shape: f32[8,16], index: 2, kind: input, shape index: {}]
  %s3 = inlined_call_operand.vmem [shape: f32[40,8], index: 3, kind: output, shape index: {0}]
  %s4 = inlined_call_operand.vmem [shape: f32[40,8], index: 4, kind: output, shape index: {1}]
  %5 = xla_tuple %s3, %s4
  %s6 = sld [smem:[#allocation0]]
  $region30: #{tpu_custom_call.1} parent=0
    _
  %s8 = ssub.s32 1, %s6
  %s9 = scalar_select 0, %s8, %s6
  // Predicated region
  $region2: #{tpu_custom_call.1} parent=0 // pred_check
    _
  $region3: #{tpu_custom_call.1} parent=0 // pred_check_branch
    %11 = sbr.rel (0) target = $region5
  $region4: #{tpu_custom_call.1} parent=0 // pred_region
    _
  $region5: #{tpu_custom_call.1} parent=0 // pred_fallthru
    _
  // Predicated region
  $region6: #{tpu_custom_call.1} parent=0 // pred_check
    _
  $region7: #{tpu_custom_call.1} parent=0 // pred_check_branch
    %13 = sbr.rel (0) target = $region9
  $region8: #{tpu_custom_call.1} parent=0 // pred_region
    _
  $region9: #{tpu_custom_call.1} parent=0 // pred_fallthru
    _
  // Predicated region
  $region10: #{tpu_custom_call.1} parent=0 // pred_check
    _
  $region11: #{tpu_custom_call.1} parent=0 // pred_check_branch
    %15 = sbr.rel (0) target = $region13
  $region12: #{tpu_custom_call.1} parent=0 // pred_region
    _
  $region13: #{tpu_custom_call.1} parent=0 // pred_fallthru
    _
  %v16 = vld [vmem:[%s0] sm:$0xff]
  %v17 = vld [vmem:[%s0 + $0x8] sm:$0xff]
  %v18 = vld [vmem:[%s0 + $0x10] sm:$0xff]
  %v19 = vld [vmem:[%s0 + $0x18] sm:$0xff]
  %v20 = vld [vmem:[%s0 + $0x20] sm:$0xff]
  %v21 = vld [vmem:[%s1] sm:$0xff]
  %v22 = vld [vmem:[%s1 + $0x8] sm:$0xff]
  %vm23 = vcmask 64512
  %v25 = vsel %vm23, %v16, 0
  %v28 = vsel %vm23, %v17, 0
  %v31 = vsel %vm23, %v18, 0
  %v34 = vsel %vm23, %v19, 0
  %v37 = vsel %vm23, %v20, 0
  %v40 = vsel %vm23, %v21, 0
  %v43 = vsel %vm23, %v22, 0
  %45 = vmatprep.subr.mxu0 0.0
  %46 = vmatpush1.xpose.msra.mxu0 0.0
  %47 = vmatprep.subr.mxu0 0.0
  %48 = vmatpush1.xpose.msra.mxu0 0.0
  %49 = vmatprep.subr.mxu0 0.0
  %50 = vmatpush1.xpose.msra.mxu0 0.0
  %51 = vmatprep.subr.mxu0 0.0
  %52 = vmatpush1.xpose.msra.mxu0 0.0
  %53 = vmatprep.subr.mxu0 0.0
  %54 = vmatpush1.xpose.msra.mxu0 0.0
  %55 = vmatprep.subr.mxu0 0.0
  %56 = vmatpush1.xpose.msra.mxu0 0.0
  %57 = vmatprep.subr.mxu0 0.0
  %58 = vmatpush1.xpose.msra.mxu0 0.0
  %59 = vmatprep.subr.mxu0 0.0
  %60 = vmatpush1.xpose.msra.mxu0 0.0
  %61 = vmatprep.subr.mxu0 0.0
  %62 = vmatpush1.xpose.msra.mxu0 0.0
  %63 = vmatprep.subr.mxu0 0.0
  %64 = vmatpush1.xpose.msra.mxu0 0.0
  %65 = vmatprep.subr.mxu0 0.0
  %66 = vmatpush1.xpose.msra.mxu0 0.0
  %67 = vmatprep.subr.mxu0 0.0
  %68 = vmatpush1.xpose.msra.mxu0 0.0
  %69 = vmatprep.subr.mxu0 0.0
  %70 = vmatpush1.xpose.msra.mxu0 0.0
  %71 = vmatprep.subr.mxu0 0.0
  %72 = vmatpush1.xpose.msra.mxu0 0.0
  %73 = vmatprep.subr.mxu0 0.0
  %74 = vmatpush1.xpose.msra.mxu0 %v43
  %75 = vmatprep.subr.mxu0 0.0
  %76 = vmatpush1.xpose.msra.mxu0 %v40
  %77 = vmatprep.subr.mxu0 0.0
  %78 = vmatpush2.xpose.msra.mxu0 0.0
  %79 = vmatprep.subr.mxu0 0.0
  %80 = vmatpush2.xpose.msra.mxu0 0.0
  %81 = vmatprep.subr.mxu0 0.0
  %82 = vmatpush2.xpose.msra.mxu0 0.0
  %83 = vmatprep.subr.mxu0 0.0
  %84 = vmatpush2.xpose.msra.mxu0 0.0
  %85 = vmatprep.subr.mxu0 0.0
  %86 = vmatpush2.xpose.msra.mxu0 0.0
  %87 = vmatprep.subr.mxu0 0.0
  %88 = vmatpush2.xpose.msra.mxu0 0.0
  %89 = vmatprep.subr.mxu0 0.0
  %90 = vmatpush2.xpose.msra.mxu0 0.0
  %91 = vmatprep.subr.mxu0 0.0
  %92 = vmatpush2.xpose.msra.mxu0 0.0
  %93 = vmatprep.subr.mxu0 0.0
  %94 = vmatpush2.xpose.msra.mxu0 0.0
  %95 = vmatprep.subr.mxu0 0.0
  %96 = vmatpush2.xpose.msra.mxu0 0.0
  %97 = vmatprep.subr.mxu0 0.0
  %98 = vmatpush2.xpose.msra.mxu0 0.0
  %99 = vmatprep.subr.mxu0 0.0
  %100 = vmatpush2.xpose.msra.mxu0 0.0
  %101 = vmatprep.subr.mxu0 0.0
  %102 = vmatpush2.xpose.msra.mxu0 0.0
  %103 = vmatprep.subr.mxu0 0.0
  %104 = vmatpush2.xpose.msra.mxu0 0.0
  %105 = vmatprep.subr.mxu0 0.0
  %106 = vmatpush2.xpose.msra.mxu0 0.0
  %107 = vmatprep.subr.mxu0 0.0
  %108 = vmatpush2.xpose.msra.mxu0 0.0
  %109 = vmatprep.mubr.f32.mxu0 0.0
  %110 = vmatmul.mubr.f32.gmra.mxu0 %v25
  %v111 = vpop.f32.mrf.mxu0
  %v112 = vadd.f32 0.0, %v111
  %v113 = vpop.f32.mrf.mxu0
  %114 = vmatprep.mubr.f32.mxu0 0.0
  %115 = vmatmul.mubr.f32.gmra.mxu0 %v28
  %v116 = vpop.f32.mrf.mxu0
  %v117 = vadd.f32 0.0, %v116
  %v118 = vpop.f32.mrf.mxu0
  %119 = vmatprep.mubr.f32.mxu0 0.0
  %120 = vmatmul.mubr.f32.gmra.mxu0 %v31
  %v121 = vpop.f32.mrf.mxu0
  %v122 = vadd.f32 0.0, %v121
  %v123 = vpop.f32.mrf.mxu0
  %124 = vmatprep.mubr.f32.mxu0 0.0
  %125 = vmatmul.mubr.f32.gmra.mxu0 %v34
  %v126 = vpop.f32.mrf.mxu0
  %v127 = vadd.f32 0.0, %v126
  %v128 = vpop.f32.mrf.mxu0
  %129 = vmatprep.mubr.f32.mxu0 0.0
  %130 = vmatmul.mubr.f32.gmra.mxu0 %v37
  %v131 = vpop.f32.mrf.mxu0
  %v132 = vadd.f32 0.0, %v131
  %v133 = vpop.f32.mrf.mxu0
  %134 = vdwg.mxu0
  %v135 = vld [vmem:[%s2] sm:$0xff]
  %vm136 = vcmask 130048
  %v138 = vsel %vm136, %v112, 0
  %v141 = vsel %vm136, %v117, 0
  %v144 = vsel %vm136, %v122, 0
  %v147 = vsel %vm136, %v127, 0
  %v150 = vsel %vm136, %v132, 0
  %v153 = vsel %vm136, %v135, 0
  %155 = vmatprep.subr.mxu0 0.0
  %156 = vmatpush1.xpose.msra.mxu0 0.0
  %157 = vmatprep.subr.mxu0 0.0
  %158 = vmatpush1.xpose.msra.mxu0 0.0
  %159 = vmatprep.subr.mxu0 0.0
  %160 = vmatpush1.xpose.msra.mxu0 0.0
  %161 = vmatprep.subr.mxu0 0.0
  %162 = vmatpush1.xpose.msra.mxu0 0.0
  %163 = vmatprep.subr.mxu0 0.0
  %164 = vmatpush1.xpose.msra.mxu0 0.0
  %165 = vmatprep.subr.mxu0 0.0
  %166 = vmatpush1.xpose.msra.mxu0 0.0
  %167 = vmatprep.subr.mxu0 0.0
  %168 = vmatpush1.xpose.msra.mxu0 0.0
  %169 = vmatprep.subr.mxu0 0.0
  %170 = vmatpush1.xpose.msra.mxu0 0.0
  %171 = vmatprep.subr.mxu0 0.0
  %172 = vmatpush1.xpose.msra.mxu0 0.0
  %173 = vmatprep.subr.mxu0 0.0
  %174 = vmatpush1.xpose.msra.mxu0 0.0
  %175 = vmatprep.subr.mxu0 0.0
  %176 = vmatpush1.xpose.msra.mxu0 0.0
  %177 = vmatprep.subr.mxu0 0.0
  %178 = vmatpush1.xpose.msra.mxu0 0.0
  %179 = vmatprep.subr.mxu0 0.0
  %180 = vmatpush1.xpose.msra.mxu0 0.0
  %181 = vmatprep.subr.mxu0 0.0
  %182 = vmatpush1.xpose.msra.mxu0 0.0
  %183 = vmatprep.subr.mxu0 0.0
  %184 = vmatpush1.xpose.msra.mxu0 0.0
  %185 = vmatprep.subr.mxu0 0.0
  %186 = vmatpush1.xpose.msra.mxu0 %v153
  %187 = vmatprep.subr.mxu0 0.0
  %188 = vmatpush2.xpose.msra.mxu0 0.0
  %189 = vmatprep.subr.mxu0 0.0
  %190 = vmatpush2.xpose.msra.mxu0 0.0
  %191 = vmatprep.subr.mxu0 0.0
  %192 = vmatpush2.xpose.msra.mxu0 0.0
  %193 = vmatprep.subr.mxu0 0.0
  %194 = vmatpush2.xpose.msra.mxu0 0.0
  %195 = vmatprep.subr.mxu0 0.0
  %196 = vmatpush2.xpose.msra.mxu0 0.0
  %197 = vmatprep.subr.mxu0 0.0
  %198 = vmatpush2.xpose.msra.mxu0 0.0
  %199 = vmatprep.subr.mxu0 0.0
  %200 = vmatpush2.xpose.msra.mxu0 0.0
  %201 = vmatprep.subr.mxu0 0.0
  %202 = vmatpush2.xpose.msra.mxu0 0.0
  %203 = vmatprep.subr.mxu0 0.0
  %204 = vmatpush2.xpose.msra.mxu0 0.0
  %205 = vmatprep.subr.mxu0 0.0
  %206 = vmatpush2.xpose.msra.mxu0 0.0
  %207 = vmatprep.subr.mxu0 0.0
  %208 = vmatpush2.xpose.msra.mxu0 0.0
  %209 = vmatprep.subr.mxu0 0.0
  %210 = vmatpush2.xpose.msra.mxu0 0.0
  %211 = vmatprep.subr.mxu0 0.0
  %212 = vmatpush2.xpose.msra.mxu0 0.0
  %213 = vmatprep.subr.mxu0 0.0
  %214 = vmatpush2.xpose.msra.mxu0 0.0
  %215 = vmatprep.subr.mxu0 0.0
  %216 = vmatpush2.xpose.msra.mxu0 0.0
  %217 = vmatprep.subr.mxu0 0.0
  %218 = vmatpush2.xpose.msra.mxu0 0.0
  %219 = vmatprep.mubr.f32.mxu0 0.0
  %220 = vmatmul.mubr.f32.gmra.mxu0 %v138
  %v221 = vpop.f32.mrf.mxu0
  %v222 = vadd.f32 0.0, %v221
  %v223 = vpop.f32.mrf.mxu0
  %224 = vmatprep.mubr.f32.mxu0 0.0
  %225 = vmatmul.mubr.f32.gmra.mxu0 %v141
  %v226 = vpop.f32.mrf.mxu0
  %v227 = vadd.f32 0.0, %v226
  %v228 = vpop.f32.mrf.mxu0
  %229 = vmatprep.mubr.f32.mxu0 0.0
  %230 = vmatmul.mubr.f32.gmra.mxu0 %v144
  %v231 = vpop.f32.mrf.mxu0
  %v232 = vadd.f32 0.0, %v231
  %v233 = vpop.f32.mrf.mxu0
  %234 = vmatprep.mubr.f32.mxu0 0.0
  %235 = vmatmul.mubr.f32.gmra.mxu0 %v147
  %v236 = vpop.f32.mrf.mxu0
  %v237 = vadd.f32 0.0, %v236
  %v238 = vpop.f32.mrf.mxu0
  %239 = vmatprep.mubr.f32.mxu0 0.0
  %240 = vmatmul.mubr.f32.gmra.mxu0 %v150
  %v241 = vpop.f32.mrf.mxu0
  %v242 = vadd.f32 0.0, %v241
  %v243 = vpop.f32.mrf.mxu0
  %244 = vdwg.mxu0
  %vm245 = vcmp.gt.f32.partialorder 0.0, 1.0
  %v246 = vsel %vm245, -1.0, 0.0
  %v247 = vadd.f32 %v246, %v222
  %vm248 = vcmp.gt.f32.partialorder %v247, 1.0
  %v249 = vsel %vm248, 1, 0
  %v250 = vcvt.s32.f32 %v249
  %v251 = vsub.f32 %v247, 1.0
  %v252 = vsel %vm248, %v251, %v247
  %v253 = vadd.f32 %v252, %v227
  %vm254 = vcmp.gt.f32.partialorder %v253, 1.0
  %v255 = vsel %vm254, 1, 0
  %v256 = vcvt.s32.f32 %v255
  %v257 = vsub.f32 %v253, 1.0
  %v258 = vsel %vm254, %v257, %v253
  %v259 = vadd.f32 %v258, %v232
  %vm260 = vcmp.gt.f32.partialorder %v259, 1.0
  %v261 = vsel %vm260, 1, 0
  %v262 = vcvt.s32.f32 %v261
  %v263 = vsub.f32 %v259, 1.0
  %v264 = vsel %vm260, %v263, %v259
  %v265 = vadd.f32 %v264, %v237
  %vm266 = vcmp.gt.f32.partialorder %v265, 1.0
  %v267 = vsel %vm266, 1, 0
  %v268 = vcvt.s32.f32 %v267
  %v269 = vsub.f32 %v265, 1.0
  %v270 = vsel %vm266, %v269, %v265
  %v271 = vadd.f32 %v270, %v242
  %vm272 = vcmp.gt.f32.partialorder %v271, 1.0
  %v273 = vsel %vm272, 1, 0
  %v274 = vcvt.s32.f32 %v273
  %275 = vst.msk [vmem:[%s3] sm:$0xff] %vm23, %v250
  %276 = vst.msk [vmem:[%s3 + $0x8] sm:$0xff] %vm23, %v256
  %277 = vst.msk [vmem:[%s3 + $0x10] sm:$0xff] %vm23, %v262
  %278 = vst.msk [vmem:[%s3 + $0x18] sm:$0xff] %vm23, %v268
  %279 = vst.msk [vmem:[%s3 + $0x20] sm:$0xff] %vm23, %v274
  %280 = vst.msk [vmem:[%s4] sm:$0xff] %vm23, %v247
  %281 = vst.msk [vmem:[%s4 + $0x8] sm:$0xff] %vm23, %v253
  %282 = vst.msk [vmem:[%s4 + $0x10] sm:$0xff] %vm23, %v259
  %283 = vst.msk [vmem:[%s4 + $0x18] sm:$0xff] %vm23, %v265
  %284 = vst.msk [vmem:[%s4 + $0x20] sm:$0xff] %vm23, %v271
  // Predicated region
  $region14: #{tpu_custom_call.1} parent=0 // pred_check
    _
  $region15: #{tpu_custom_call.1} parent=0 // pred_check_branch
    %286 = sbr.rel (0) target = $region17
  $region16: #{tpu_custom_call.1} parent=0 // pred_region
    _
  $region17: #{tpu_custom_call.1} parent=0 // pred_fallthru
    _
  // Predicated region
  $region18: #{tpu_custom_call.1} parent=0 // pred_check
    _
  $region19: #{tpu_custom_call.1} parent=0 // pred_check_branch
    %288 = sbr.rel (0) target = $region21
  $region20: #{tpu_custom_call.1} parent=0 // pred_region
    _
  $region21: #{tpu_custom_call.1} parent=0 // pred_fallthru
    _
  // Predicated region
  $region22: #{tpu_custom_call.1} parent=0 // pred_check
    _
  $region23: #{tpu_custom_call.1} parent=0 // pred_check_branch
    %290 = sbr.rel (0) target = $region25
  $region24: #{tpu_custom_call.1} parent=0 // pred_region
    _
  $region25: #{tpu_custom_call.1} parent=0 // pred_fallthru
    _
  // Predicated region
  $region26: #{tpu_custom_call.1} parent=0 // pred_check
    _
  $region27: #{tpu_custom_call.1} parent=0 // pred_check_branch
    %292 = sbr.rel (0) target = $region29
  $region28: #{tpu_custom_call.1} parent=0 // pred_region
    _
  $region29: #{tpu_custom_call.1} parent=0 // pred_fallthru
    _

</llo_original>
